<compile_context>
chip_gen: v7x
topology: tpu7x:2x2x1
jax: 0.10.0
libtpu: 0.0.40
codegen_flags: <defaults>
</compile_context>

<pallas_src>
import functools

import jax
import jax.numpy as jnp
from jax import lax
from jax.experimental import pallas as pl
from jax.experimental.pallas import tpu as pltpu


def _round_up(v, m):
    return ((v + m - 1) // m) * m


def prepare_clf_head_params(weight, bias):
    """One-time parameter prep (call once at init, OUTSIDE the hot path).

    weight: (C, E) nn.Linear weight (native dtype, e.g. bf16)
    bias:   (C,)
    Returns (w_prep (E, C_pad) native dtype, b_prep (1, C_pad) f32).
    """
    C, _E = weight.shape
    C_pad = _round_up(C, 128)
    w_prep = jnp.pad(weight.T, ((0, 0), (0, C_pad - C)))          # keep native dtype
    b_prep = jnp.pad(bias.astype(jnp.float32), (0, C_pad - C)).reshape(1, C_pad)
    return w_prep, b_prep


def _clf_head_kernel(sel_ref, h_ref, w_ref, b_ref, out_ref, rows_ref, sems, *, tm):
    # sel_ref:  SMEM (B_pad,) int32  -- flat clf-token row indices (prefetched)
    # h_ref:    HBM  (B*S, E)        -- raw ref (memory_space=pl.ANY)
    # w_ref:    VMEM (E, TN)         -- weight tile, native dtype
    # b_ref:    VMEM (1, TN)         -- f32 bias tile
    # out_ref:  VMEM (TM, TN)        -- f32 logits tile (single dense store)
    # rows_ref: VMEM (TM, E)         -- gathered clf-token rows (scratch)
    # sems:     DMA semaphores (TM,)
    r = pl.program_id(1)          # row-block axis (innermost)
    base = r * tm

    # Fused gather: pull the TM clf-token rows for this block straight from
    # HBM into VMEM scratch (issue all DMAs, then wait).
    @pl.loop(0, tm)
    def _(t):
        pltpu.make_async_copy(
            h_ref.at[sel_ref[base + t]], rows_ref.at[t], sems.at[t]).start()

    @pl.loop(0, tm)
    def _(t):
        pltpu.make_async_copy(h_ref.at[0], rows_ref.at[t], sems.at[t]).wait()

    # TODO(synk): dropout is identity here (eval mode); train-mode clf_pdrop
    # would use pltpu.prng_seed / pltpu.prng_random_bits.
    logits = jnp.dot(rows_ref[...], w_ref[...],
                     preferred_element_type=jnp.float32,
                     precision=lax.Precision.HIGHEST)
    out_ref[...] = (logits + b_ref[...]).astype(out_ref.dtype)


def clf_head_forward(h, x, w_prep, b_prep, clf_token, n_class):
    """h: (B, S, E), x: (B, S, 2) int, w_prep: (E, C_pad), b_prep: (1, C_pad)."""
    B, S, E = h.shape
    E_w, C_pad = w_prep.shape
    assert E_w == E

    # --- clf-token row indices (one per sequence), plain scalar-ish glue ----
    # NOTE: assumes exactly one clf_token per sequence (argmax picks the first
    # match / row 0 if missing); differs from boolean-mask semantics only when
    # that assumption is violated.
    mask = x[..., 0] == clf_token                            # (B, S)
    pos = jnp.argmax(mask, axis=1).astype(jnp.int32)         # (B,)
    sel_idx = pos + jnp.arange(B, dtype=jnp.int32) * S       # flat rows in (B*S, E)

    # --- tiling --------------------------------------------------------------
    TM = min(_round_up(B, 8), 256)        # sublane-dense row block (256 fills v6e/v7x MXU)
    B_pad = _round_up(B, TM)
    TN = min(C_pad, 512)                  # lane-dense class block
    n_row = B_pad // TM
    n_col = C_pad // TN

    sel_pad = jnp.pad(sel_idx, (0, B_pad - B))   # padded rows -> index 0 (sliced off later)
    h_flat = h.reshape(B * S, E)                 # stays in HBM (pl.ANY), no copy

    # Explicit VMEM budget: double-buffered W / bias / out tiles + gather
    # scratch + headroom (keeps large heads within v7x 64 MiB / v5e 16 MiB).
    itm_h = jnp.dtype(h.dtype).itemsize
    itm_w = jnp.dtype(w_prep.dtype).itemsize
    vmem_bytes = (2 * (E * TN * itm_w + TN * 4 + TM * TN * 4)
                  + TM * max(E, 128) * itm_h + (2 << 20))
    vmem_limit = int(min(max(vmem_bytes, 8 << 20), 100 << 20))

    grid_spec = pltpu.PrefetchScalarGridSpec(
        num_scalar_prefetch=1,
        # Row axis innermost: the (E, TN) weight tile's block index is constant
        # across consecutive steps, so it is DMA'd once per class tile.
        grid=(n_col, n_row),
        in_specs=[
            pl.BlockSpec(memory_space=pl.ANY),                   # h_flat stays in HBM
            pl.BlockSpec((E, TN), lambda c, r, sel: (0, c)),     # weight tile
            pl.BlockSpec((1, TN), lambda c, r, sel: (0, c)),     # bias tile
        ],
        out_specs=pl.BlockSpec((TM, TN), lambda c, r, sel: (r, c)),
        scratch_shapes=[
            pltpu.VMEM((TM, E), h.dtype),          # gathered rows, native dtype
            pltpu.SemaphoreType.DMA((TM,)),
        ],
    )

    out_pad = pl.pallas_call(
        functools.partial(_clf_head_kernel, tm=TM),
        out_shape=jax.ShapeDtypeStruct((B_pad, C_pad), jnp.float32),
        grid_spec=grid_spec,
        compiler_params=pltpu.CompilerParams(
            dimension_semantics=("parallel", "parallel"),
            vmem_limit_bytes=vmem_limit),
    )(sel_pad, h_flat, w_prep, b_prep)

    # NOTE: this slice is an extra f32 copy; consumers that can mask padded
    # classes (e.g. -inf before softmax) may keep out_pad directly.
    return out_pad[:B, :n_class]


if __name__ == "__main__":
    B, S, E, C = 4, 8, 32, 3
    clf_token = 11

    key = jax.random.PRNGKey(0)
    k_h, k_x, k_w, k_b = jax.random.split(key, 4)

    # Inputs
    h = jax.random.normal(k_h, (B, S, E), dtype=jnp.float32)
    # token ids strictly below clf_token so there are no accidental matches
    x = jax.random.randint(k_x, (B, S, 2), 0, clf_token, dtype=jnp.int32)
    clf_pos = jnp.array([S - 1, 3, 5, 0], dtype=jnp.int32)  # one per sequence
    x = x.at[jnp.arange(B), clf_pos, 0].set(clf_token)

    # Parameters (nn.Linear(n_embd, n_class): normal_(weight, std=0.02), normal_(bias, 0))
    weight = 0.02 * jax.random.normal(k_w, (C, E), dtype=jnp.float32)
    bias = jax.random.normal(k_b, (C,), dtype=jnp.float32)

    # One-time parameter prep (outside the per-call hot path).
    w_prep, b_prep = prepare_clf_head_params(weight, bias)

    out = clf_head_forward(h, x, w_prep, b_prep, clf_token, C)
    out = jax.block_until_ready(out)

    # Pure-JAX reference for correctness
    clf_h = h.reshape(-1, E)
    flat = x[..., 0].reshape(-1)
    sel = jnp.nonzero(flat == clf_token, size=B)[0]
    ref = jnp.dot(clf_h[sel], weight.T, precision=lax.Precision.HIGHEST) + bias

    assert out.shape == (B, C)
    assert jnp.allclose(out, ref, atol=2e-3, rtol=2e-3), (out, ref)
    print("KERNEL_OK")
</pallas_src>

<mosaic_0001>
module attributes {stable_mosaic.version = 11 : i64} {
  func.func @_clf_head_kernel(%arg0: i32, %arg1: i32, %arg2: memref<8xi32, #tpu.memory_space<smem>>, %arg3: memref<32x32xf32, #tpu.memory_space<any>>, %arg4: memref<32x128xf32, #tpu.memory_space<vmem>>, %arg5: memref<1x128xf32, #tpu.memory_space<vmem>>, %arg6: memref<8x128xf32, #tpu.memory_space<vmem>>, %arg7: memref<8x32xf32, #tpu.memory_space<vmem>>, %arg8: memref<8x!tpu.dma_semaphore, #tpu.memory_space<semaphore_mem>>) attributes {dimension_semantics = [#tpu.dimension_semantics<parallel>, #tpu.dimension_semantics<parallel>], iteration_bounds = array<i64: 1, 1>, scalar_prefetch = 1 : i64, scratch_operands = 2 : i64, tpu.core_type = #tpu.core_type<tc>, window_params = [{}, {transform_indices = @transform_1, window_bounds = array<i64: 32, 128>}, {transform_indices = @transform_2, window_bounds = array<i64: 1, 128>}, {transform_indices = @transform_3, window_bounds = array<i64: 8, 128>}]} {
    %c8_i32 = arith.constant 8 : i32
    %0 = arith.muli %arg1, %c8_i32 : i32
    %c0_i32 = arith.constant 0 : i32
    %c8_i32_0 = arith.constant 8 : i32
    %1 = arith.addi %c0_i32, %c8_i32_0 : i32
    %c1_i32 = arith.constant 1 : i32
    scf.for %arg9 = %c0_i32 to %1 step %c1_i32  : i32 {
      %c1_i32_13 = arith.constant 1 : i32
      %10 = arith.muli %arg9, %c1_i32_13 : i32
      %c0_i32_14 = arith.constant 0 : i32
      %11 = arith.addi %c0_i32_14, %10 : i32
      %12 = arith.addi %0, %11 : i32
      %13 = arith.index_cast %12 : i32 to index
      %14 = memref.load %arg2[%13] : memref<8xi32, #tpu.memory_space<smem>>
      %c0_i32_15 = arith.constant 0 : i32
      %15 = tpu.memref_slice %arg3[%14, %c0_i32_15] : memref<32x32xf32, #tpu.memory_space<any>> -> memref<1x32xf32, #tpu.memory_space<any>>
      %16 = tpu.memref_squeeze %15 : memref<1x32xf32, #tpu.memory_space<any>> -> memref<32xf32, #tpu.memory_space<any>>
      %c0_i32_16 = arith.constant 0 : i32
      %17 = tpu.memref_slice %arg7[%11, %c0_i32_16] : memref<8x32xf32, #tpu.memory_space<vmem>> -> memref<1x32xf32, #tpu.memory_space<vmem>>
      %18 = tpu.memref_squeeze %17 : memref<1x32xf32, #tpu.memory_space<vmem>> -> memref<32xf32, #tpu.memory_space<vmem>>
      %19 = tpu.memref_slice %arg8[%11] : memref<8x!tpu.dma_semaphore, #tpu.memory_space<semaphore_mem>> -> memref<1x!tpu.dma_semaphore, #tpu.memory_space<semaphore_mem>>
      %20 = tpu.memref_squeeze %19 : memref<1x!tpu.dma_semaphore, #tpu.memory_space<semaphore_mem>> -> memref<!tpu.dma_semaphore, #tpu.memory_space<semaphore_mem>>
      tpu.enqueue_dma source(%16 : memref<32xf32, #tpu.memory_space<any>>) target(%18 : memref<32xf32, #tpu.memory_space<vmem>>) target_semaphore(%20 : memref<!tpu.dma_semaphore, #tpu.memory_space<semaphore_mem>>)
    }
    %c8_i32_1 = arith.constant 8 : i32
    %c0_i32_2 = arith.constant 0 : i32
    %c8_i32_3 = arith.constant 8 : i32
    %2 = arith.addi %c0_i32_2, %c8_i32_3 : i32
    %c1_i32_4 = arith.constant 1 : i32
    scf.for %arg9 = %c0_i32_2 to %2 step %c1_i32_4  : i32 {
      %c1_i32_13 = arith.constant 1 : i32
      %10 = arith.muli %arg9, %c1_i32_13 : i32
      %c0_i32_14 = arith.constant 0 : i32
      %11 = arith.addi %c0_i32_14, %10 : i32
      %c0_i32_15 = arith.constant 0 : i32
      %c0_i32_16 = arith.constant 0 : i32
      %12 = tpu.memref_slice %arg3[%c0_i32_15, %c0_i32_16] : memref<32x32xf32, #tpu.memory_space<any>> -> memref<1x32xf32, #tpu.memory_space<any>>
      %13 = tpu.memref_squeeze %12 : memref<1x32xf32, #tpu.memory_space<any>> -> memref<32xf32, #tpu.memory_space<any>>
      %c0_i32_17 = arith.constant 0 : i32
      %14 = tpu.memref_slice %arg7[%11, %c0_i32_17] : memref<8x32xf32, #tpu.memory_space<vmem>> -> memref<1x32xf32, #tpu.memory_space<vmem>>
      %15 = tpu.memref_squeeze %14 : memref<1x32xf32, #tpu.memory_space<vmem>> -> memref<32xf32, #tpu.memory_space<vmem>>
      %16 = tpu.memref_slice %arg8[%11] : memref<8x!tpu.dma_semaphore, #tpu.memory_space<semaphore_mem>> -> memref<1x!tpu.dma_semaphore, #tpu.memory_space<semaphore_mem>>
      %17 = tpu.memref_squeeze %16 : memref<1x!tpu.dma_semaphore, #tpu.memory_space<semaphore_mem>> -> memref<!tpu.dma_semaphore, #tpu.memory_space<semaphore_mem>>
      tpu.wait_dma2 semaphore(%17 : memref<!tpu.dma_semaphore, #tpu.memory_space<semaphore_mem>>) src(%13 : memref<32xf32, #tpu.memory_space<any>>) dst(%15 : memref<32xf32, #tpu.memory_space<vmem>>)
    }
    %c8_i32_5 = arith.constant 8 : i32
    %c0 = arith.constant 0 : index
    %c0_6 = arith.constant 0 : index
    %3 = vector.load %arg7[%c0, %c0_6] : memref<8x32xf32, #tpu.memory_space<vmem>>, vector<8x32xf32>
    %c0_7 = arith.constant 0 : index
    %c0_8 = arith.constant 0 : index
    %4 = vector.load %arg4[%c0_7, %c0_8] : memref<32x128xf32, #tpu.memory_space<vmem>>, vector<32x128xf32>
    %cst = arith.constant dense<0.000000e+00> : vector<8x128xf32>
    %5 = tpu.matmul %3, %4, %cst {dimension_numbers = #tpu.dot_dimension_numbers<[1], [0], [0], [1], [0, 0, 1, 1], [], []>, precision = #tpu.contract_precision<fp32>} : vector<8x32xf32>, vector<32x128xf32>, vector<8x128xf32> -> vector<8x128xf32>
    %c0_9 = arith.constant 0 : index
    %c0_10 = arith.constant 0 : index
    %6 = vector.load %arg5[%c0_9, %c0_10] : memref<1x128xf32, #tpu.memory_space<vmem>>, vector<1x128xf32>
    %7 = vector.broadcast %6 : vector<1x128xf32> to vector<8x128xf32>
    %8 = arith.addf %5, %7 : vector<8x128xf32>
    %c0_11 = arith.constant 0 : index
    %c0_12 = arith.constant 0 : index
    %9 = vector.load %arg6[%c0_11, %c0_12] : memref<8x128xf32, #tpu.memory_space<vmem>>, vector<8x128xf32>
    tpu.vector_store %arg6[%c0_11, %c0_12], %8 {strides = array<i32>} : memref<8x128xf32, #tpu.memory_space<vmem>>, vector<8x128xf32>,
    return
  }
  func.func @transform_1(%arg0: i32, %arg1: i32, %arg2: memref<8xi32, #tpu.memory_space<smem>>) -> (i32, i32) {
    %c0_i32 = arith.constant 0 : i32
    %c0_i32_0 = arith.constant 0 : i32
    return %c0_i32, %arg0 : i32, i32
  }
  func.func @transform_2(%arg0: i32, %arg1: i32, %arg2: memref<8xi32, #tpu.memory_space<smem>>) -> (i32, i32) {
    %c0_i32 = arith.constant 0 : i32
    %c0_i32_0 = arith.constant 0 : i32
    return %c0_i32, %arg0 : i32, i32
  }
  func.func @transform_3(%arg0: i32, %arg1: i32, %arg2: memref<8xi32, #tpu.memory_space<smem>>) -> (i32, i32) {
    %c0_i32 = arith.constant 0 : i32
    return %arg1, %arg0 : i32, i32
  }
}

</mosaic_0001>

<llo_original>
// kernel: tpu_custom_call.1
$region0: #{tpu_custom_call.1}
  #allocation0 [shape = 'u32[]', space=smem, size = 0x4, offset = 0x4, fixed_abs, tag = 'smem constant byte address 0x4 - core index']
  #allocation1 [shape = 'u32[144,128]{1,0:T(1,128)}', space=vmem, size = 0x12000, scoped, tag = 'internal scratch']
  #allocation2 [shape = 'f32[8,32]{1,0:T(8,128)}', space=vmem, size = 0x1000, scoped, tag = 'scratch operand']
  #allocation3 [shape = 's32[8]{0}', space=sflag, size = 0x20, scoped, tag = 'scratch operand']
  #allocation4 [shape = 's32[1]{0}', space=sflag, size = 0x4, scoped, tag = 'scoped memory for tpu_custom_call.1']
  #allocation5 [shape = 'u8[512]{0}', space=smem, size = 0x200, scoped, tag = 'prefetched SMEM operand 0']
  #allocation10 [shape = 's32[]', space=sflag, size = 0x4, offset = 0, fixed_abs, tag = 'sflag constant byte address 0x0 - dummy sync flag']
  #allocation11 [shape = 's32[]', space=sflag, size = 0x4, offset = 0, fixed_abs, tag = 'sflag constant byte address 0x0 - dummy sync flag']
  #allocation12 [shape = 'u32[]', space=smem, size = 0x4, offset = 0x44, fixed_abs, tag = 'smem constant byte address 0x44 - assertion arg 0']
  #allocation13 [shape = 'u32[]', space=smem, size = 0x4, offset = 0x48, fixed_abs, tag = 'smem constant byte address 0x48 - assertion arg 1']
  %s0 = inlined_call_operand.hbm [shape: s32[8], index: 0, kind: input, shape index: {}]
  %s1 = inlined_call_operand.hbm [shape: f32[32,32], index: 1, kind: input, shape index: {}]
  %s2 = inlined_call_operand.hbm [shape: f32[32,128], index: 2, kind: input, shape index: {}]
  %s3 = inlined_call_operand.vmem [shape: f32[1,128], index: 3, kind: input, shape index: {}]
  %s4 = inlined_call_operand.hbm [shape: f32[8,128], index: 4, kind: output, shape index: {}]
  %s5 = sld [smem:[#allocation0]]
  $region40: #{tpu_custom_call.1} parent=0
    _
  %s7 = ssub.s32 1, %s5
  %s8 = scalar_select 0, %s7, %s5
  %10 = dma.hbm_to_smem %s0, 16, [#allocation5], [#allocation4]
  %11 = dma.done [#allocation4], 16
  %12 = sfence
  $region1: #{tpu_custom_call.1} parent=0
    #allocation6 [shape = 'u8[16384]{0}', space=vmem, size = 0x4000, scoped, tag = 'input window, operand 2, single buffered']
    #allocation7 [shape = 's32[1]{0}', space=sflag, size = 0x4, scoped, tag = 'scoped memory for tpu_custom_call.1']
    #allocation8 [shape = 's32[1]{0}', space=sflag, size = 0x4, scoped, tag = 'scoped memory for tpu_custom_call.1']
    #allocation9 [shape = 'u8[4096]{0}', space=vmem, size = 0x1000, scoped, tag = 'output window, operand 0, single buffered']
    %13 = vsyncpa [#allocation7], 0
    %14 = vsyncpa [#allocation8], 0
    // Predicated region
    $region2: #{tpu_custom_call.1} parent=1 // pred_check
      _
    $region3: #{tpu_custom_call.1} parent=1 // pred_check_branch
      %16 = sbr.rel (0) target = $region5
    $region4: #{tpu_custom_call.1} parent=1 // pred_region
      %s18 = ssub.s32 512, 512
      %19 = vsyncadd [#allocation7], %s18
      %s20 = sshll.u32 [#allocation6], 4
      %s21 = int_to_ptr.vmem [resolvable:$true] %s20
      %26 = dma.hbm_to_vmem [thread:$0]  %s2, 512, %s21, [#allocation7], 128, 128, 8
    $region5: #{tpu_custom_call.1} parent=1 // pred_fallthru
      _
    // Predicated region
    $region6: #{tpu_custom_call.1} parent=1 // pred_check
      _
    $region7: #{tpu_custom_call.1} parent=1 // pred_check_branch
      %28 = sbr.rel (0) target = $region9
    $region8: #{tpu_custom_call.1} parent=1 // pred_region
      _
    $region9: #{tpu_custom_call.1} parent=1 // pred_fallthru
      _
    // Predicated region
    $region10: #{tpu_custom_call.1} parent=1 // pred_check
      _
    $region11: #{tpu_custom_call.1} parent=1 // pred_check_branch
      %30 = sbr.rel (0) target = $region13
    $region12: #{tpu_custom_call.1} parent=1 // pred_region
      %31 = dma.done [#allocation7], 512
    $region13: #{tpu_custom_call.1} parent=1 // pred_fallthru
      _
    %s32 = smul.u32 0, 8
    loop: start=0, step=1, limit=8
    $region14: #{tpu_custom_call.1} parent=1 // loop_pre_header
      _
    $region15: #{tpu_custom_call.1} parent=1 // loop_header
      %s34 = sphi 0, %s38
      %p35 = scmp.ge.s32.totalorder %s34, 8
    $region16: #{tpu_custom_call.1} parent=1 // loop_header_branch
      %37 = sbr.rel (%p35) target = $region20
    $region17: #{tpu_custom_call.1} parent=1 // loop_body
      %s39 = sadd.s32 %s32, %s34
      %s40 = sld [smem:[#allocation5 + %s39]]
      %s41 = smul.addr %s40, 16
      %s42 = scalar_lea.hbm %s1, %s41
      %s43 = scalar_lea.vmem [#allocation2], %s34
      %s44 = scalar_lea.sflag [#allocation3], %s34
      // Predicated region
      $region21: #{tpu_custom_call.1} parent=17 // pred_check
        _
      $region22: #{tpu_custom_call.1} parent=17 // pred_check_branch
        %46 = sbr.rel target = $region24
      $region23: #{tpu_custom_call.1} parent=17 // pred_region
        %47 = sst [smem:[#allocation12]] [#allocation11]
        %48 = sst [smem:[#allocation13]] [#allocation10]
      $region24: #{tpu_custom_call.1} parent=17 // pred_fallthru
        _
      %50 = shalt.err (0)
      %s52 = sshll.u32 %s43, 4
      %s53 = int_to_ptr.vmem [resolvable:$true] %s52
      %55 = dma.hbm_to_vmem [thread:$0]  %s42, 16, %s53, %s44
    $region18: #{tpu_custom_call.1} parent=1 // loop_footer
      %s38 = sadd.s32 1, %s34
    $region19: #{tpu_custom_call.1} parent=1 // loop_footer_branch
      %33 = sbr.rel target = $region15
    $region20: #{tpu_custom_call.1} parent=1 // loop_exit
      _
    loop: start=0, step=1, limit=8
    $region25: #{tpu_custom_call.1} parent=1 // loop_pre_header
      _
    $region26: #{tpu_custom_call.1} parent=1 // loop_header
      %s57 = sphi 0, %s61
      %p58 = scmp.ge.s32.totalorder %s57, 8
    $region27: #{tpu_custom_call.1} parent=1 // loop_header_branch
      %60 = sbr.rel (%p58) target = $region31
    $region28: #{tpu_custom_call.1} parent=1 // loop_body
      %s62 = scalar_lea.sflag [#allocation3], %s57
      %64 = dma.done %s62, 16
    $region29: #{tpu_custom_call.1} parent=1 // loop_footer
      %s61 = sadd.s32 1, %s57
    $region30: #{tpu_custom_call.1} parent=1 // loop_footer_branch
      %56 = sbr.rel target = $region26
    $region31: #{tpu_custom_call.1} parent=1 // loop_exit
      _
    %v65 = vld [vmem:[#allocation2] sm:$0xff]
    %v66 = vld [vmem:[#allocation6] sm:$0xff]
    %v67 = vld [vmem:[#allocation6 + $0x8] sm:$0xff]
    %v68 = vld [vmem:[#allocation6 + $0x10] sm:$0xff]
    %v69 = vld [vmem:[#allocation6 + $0x18] sm:$0xff]
    %v70 = vld [vmem:[%s3] sm:$0x1]
    %v72 = vlaneseq
    %v73 = vshrl.u32 %v72, 7
    %v74 = vsub.s32 0, %v73
    %v75 = vrot.slane %v70, %v74
    %vm77 = vcmask 261120
    %v79 = vsel %vm77, %v65, 0
    %81 = vmatprep.subr.mxu0 0.0
    %v82 = vand.u32 %v66, 4294901760
    %83 = vmatpush1.msra.mxu0 %v82
    %84 = vmatprep.subr.mxu0 0.0
    %v85 = vand.u32 %v67, 4294901760
    %86 = vmatpush1.msra.mxu0 %v85
    %87 = vmatprep.subr.mxu0 0.0
    %v88 = vand.u32 %v68, 4294901760
    %89 = vmatpush1.msra.mxu0 %v88
    %90 = vmatprep.subr.mxu0 0.0
    %v91 = vand.u32 %v69, 4294901760
    %92 = vmatpush1.msra.mxu0 %v91
    %93 = vmatprep.subr.mxu0 0.0
    %94 = vmatpush1.msra.mxu0 0.0
    %95 = vmatprep.subr.mxu0 0.0
    %96 = vmatpush1.msra.mxu0 0.0
    %97 = vmatprep.subr.mxu0 0.0
    %98 = vmatpush1.msra.mxu0 0.0
    %99 = vmatprep.subr.mxu0 0.0
    %100 = vmatpush1.msra.mxu0 0.0
    %101 = vmatprep.subr.mxu0 0.0
    %102 = vmatpush1.msra.mxu0 0.0
    %103 = vmatprep.subr.mxu0 0.0
    %104 = vmatpush1.msra.mxu0 0.0
    %105 = vmatprep.subr.mxu0 0.0
    %106 = vmatpush1.msra.mxu0 0.0
    %107 = vmatprep.subr.mxu0 0.0
    %108 = vmatpush1.msra.mxu0 0.0
    %109 = vmatprep.subr.mxu0 0.0
    %110 = vmatpush1.msra.mxu0 0.0
    %111 = vmatprep.subr.mxu0 0.0
    %112 = vmatpush1.msra.mxu0 0.0
    %113 = vmatprep.subr.mxu0 0.0
    %114 = vmatpush1.msra.mxu0 0.0
    %115 = vmatprep.subr.mxu0 0.0
    %116 = vmatpush1.msra.mxu0 0.0
    %117 = vmatprep.subr.mxu0 0.0
    %118 = vmatpush1.msra.mxu0 0.0
    %119 = vmatprep.subr.mxu0 0.0
    %120 = vmatpush1.msra.mxu0 0.0
    %121 = vmatprep.subr.mxu0 0.0
    %122 = vmatpush1.msra.mxu0 0.0
    %123 = vmatprep.subr.mxu0 0.0
    %124 = vmatpush1.msra.mxu0 0.0
    %125 = vmatprep.subr.mxu0 0.0
    %126 = vmatpush1.msra.mxu0 0.0
    %127 = vmatprep.subr.mxu0 0.0
    %128 = vmatpush1.msra.mxu0 0.0
    %129 = vmatprep.subr.mxu0 0.0
    %130 = vmatpush1.msra.mxu0 0.0
    %131 = vmatprep.subr.mxu0 0.0
    %132 = vmatpush1.msra.mxu0 0.0
    %133 = vmatprep.subr.mxu0 0.0
    %134 = vmatpush1.msra.mxu0 0.0
    %135 = vmatprep.subr.mxu0 0.0
    %136 = vmatpush1.msra.mxu0 0.0
    %137 = vmatprep.subr.mxu0 0.0
    %138 = vmatpush1.msra.mxu0 0.0
    %139 = vmatprep.subr.mxu0 0.0
    %140 = vmatpush1.msra.mxu0 0.0
    %141 = vmatprep.subr.mxu0 0.0
    %142 = vmatpush1.msra.mxu0 0.0
    %143 = vmatprep.subr.mxu0 0.0
    %144 = vmatpush1.msra.mxu0 0.0
    %145 = vmatprep.subr.mxu0 0.0
    %146 = vmatpush1.msra.mxu0 0.0
    %147 = vmatprep.subr.mxu0 0.0
    %148 = vmatpush1.msra.mxu0 0.0
    %149 = vmatprep.mubr.f32.mxu0 0.0
    %v150 = vand.u32 %v79, 4294901760
    %v151 = vsub.f32 %v79, %v150
    %v152 = vand.u32 %v151, 4294901760
    %v153 = vsub.f32 %v151, %v152
    %v154 = vand.u32 %v153, 4294901760
    %155 = vmatmul.mubr.f32.gmra.mrb[0].mxu0 %v154
    %v156 = vpop.f32.mrb[0].mxu0
    %v157 = vadd.f32 %v75, %v156
    %v158 = vpop.f32.mrb[0].mxu0
    %159 = vdwg.mxu0
    %160 = vmatprep.subr.mxu0 0.0
    %v161 = vand.u32 %v66, 4294901760
    %v162 = vsub.f32 %v66, %v161
    %v163 = vand.u32 %v162, 4294901760
    %v164 = vsub.f32 %v162, %v163
    %v165 = vand.u32 %v164, 4294901760
    %166 = vmatpush1.msra.mxu0 %v165
    %167 = vmatprep.subr.mxu0 0.0
    %v168 = vand.u32 %v67, 4294901760
    %v169 = vsub.f32 %v67, %v168
    %v170 = vand.u32 %v169, 4294901760
    %v171 = vsub.f32 %v169, %v170
    %v172 = vand.u32 %v171, 4294901760
    %173 = vmatpush1.msra.mxu0 %v172
    %174 = vmatprep.subr.mxu0 0.0
    %v175 = vand.u32 %v68, 4294901760
    %v176 = vsub.f32 %v68, %v175
    %v177 = vand.u32 %v176, 4294901760
    %v178 = vsub.f32 %v176, %v177
    %v179 = vand.u32 %v178, 4294901760
    %180 = vmatpush1.msra.mxu0 %v179
    %181 = vmatprep.subr.mxu0 0.0
    %v182 = vand.u32 %v69, 4294901760
    %v183 = vsub.f32 %v69, %v182
    %v184 = vand.u32 %v183, 4294901760
    %v185 = vsub.f32 %v183, %v184
    %v186 = vand.u32 %v185, 4294901760
    %187 = vmatpush1.msra.mxu0 %v186
    %188 = vmatprep.subr.mxu0 0.0
    %189 = vmatpush1.msra.mxu0 0.0
    %190 = vmatprep.subr.mxu0 0.0
    %191 = vmatpush1.msra.mxu0 0.0
    %192 = vmatprep.subr.mxu0 0.0
    %193 = vmatpush1.msra.mxu0 0.0
    %194 = vmatprep.subr.mxu0 0.0
    %195 = vmatpush1.msra.mxu0 0.0
    %196 = vmatprep.subr.mxu0 0.0
    %197 = vmatpush1.msra.mxu0 0.0
    %198 = vmatprep.subr.mxu0 0.0
    %199 = vmatpush1.msra.mxu0 0.0
    %200 = vmatprep.subr.mxu0 0.0
    %201 = vmatpush1.msra.mxu0 0.0
    %202 = vmatprep.subr.mxu0 0.0
    %203 = vmatpush1.msra.mxu0 0.0
    %204 = vmatprep.subr.mxu0 0.0
    %205 = vmatpush1.msra.mxu0 0.0
    %206 = vmatprep.subr.mxu0 0.0
    %207 = vmatpush1.msra.mxu0 0.0
    %208 = vmatprep.subr.mxu0 0.0
    %209 = vmatpush1.msra.mxu0 0.0
    %210 = vmatprep.subr.mxu0 0.0
    %211 = vmatpush1.msra.mxu0 0.0
    %212 = vmatprep.subr.mxu0 0.0
    %213 = vmatpush1.msra.mxu0 0.0
    %214 = vmatprep.subr.mxu0 0.0
    %215 = vmatpush1.msra.mxu0 0.0
    %216 = vmatprep.subr.mxu0 0.0
    %217 = vmatpush1.msra.mxu0 0.0
    %218 = vmatprep.subr.mxu0 0.0
    %219 = vmatpush1.msra.mxu0 0.0
    %220 = vmatprep.subr.mxu0 0.0
    %221 = vmatpush1.msra.mxu0 0.0
    %222 = vmatprep.subr.mxu0 0.0
    %223 = vmatpush1.msra.mxu0 0.0
    %224 = vmatprep.subr.mxu0 0.0
    %225 = vmatpush1.msra.mxu0 0.0
    %226 = vmatprep.subr.mxu0 0.0
    %227 = vmatpush1.msra.mxu0 0.0
    %228 = vmatprep.subr.mxu0 0.0
    %229 = vmatpush1.msra.mxu0 0.0
    %230 = vmatprep.subr.mxu0 0.0
    %231 = vmatpush1.msra.mxu0 0.0
    %232 = vmatprep.subr.mxu0 0.0
    %233 = vmatpush1.msra.mxu0 0.0
    %234 = vmatprep.subr.mxu0 0.0
    %235 = vmatpush1.msra.mxu0 0.0
    %236 = vmatprep.subr.mxu0 0.0
    %237 = vmatpush1.msra.mxu0 0.0
    %238 = vmatprep.subr.mxu0 0.0
    %239 = vmatpush1.msra.mxu0 0.0
    %240 = vmatprep.subr.mxu0 0.0
    %241 = vmatpush1.msra.mxu0 0.0
    %242 = vmatprep.subr.mxu0 0.0
    %243 = vmatpush1.msra.mxu0 0.0
    %244 = vmatprep.mubr.f32.mxu0 0.0
    %v245 = vand.u32 %v79, 4294901760
    %246 = vmatmul.mubr.f32.gmra.mrb[0].mxu0 %v245
    %v247 = vpop.f32.mrb[0].mxu0
    %v248 = vadd.f32 %v157, %v247
    %v249 = vpop.f32.mrb[0].mxu0
    %250 = vdwg.mxu0
    %251 = vmatprep.subr.mxu0 0.0
    %v252 = vand.u32 %v66, 4294901760
    %v253 = vsub.f32 %v66, %v252
    %254 = vmatpush1.msra.mxu0 %v253
    %255 = vmatprep.subr.mxu0 0.0
    %v256 = vand.u32 %v67, 4294901760
    %v257 = vsub.f32 %v67, %v256
    %258 = vmatpush1.msra.mxu0 %v257
    %259 = vmatprep.subr.mxu0 0.0
    %v260 = vand.u32 %v68, 4294901760
    %v261 = vsub.f32 %v68, %v260
    %262 = vmatpush1.msra.mxu0 %v261
    %263 = vmatprep.subr.mxu0 0.0
    %v264 = vand.u32 %v69, 4294901760
    %v265 = vsub.f32 %v69, %v264
    %266 = vmatpush1.msra.mxu0 %v265
    %267 = vmatprep.subr.mxu0 0.0
    %268 = vmatpush1.msra.mxu0 0.0
    %269 = vmatprep.subr.mxu0 0.0
    %270 = vmatpush1.msra.mxu0 0.0
    %271 = vmatprep.subr.mxu0 0.0
    %272 = vmatpush1.msra.mxu0 0.0
    %273 = vmatprep.subr.mxu0 0.0
    %274 = vmatpush1.msra.mxu0 0.0
    %275 = vmatprep.subr.mxu0 0.0
    %276 = vmatpush1.msra.mxu0 0.0
    %277 = vmatprep.subr.mxu0 0.0
    %278 = vmatpush1.msra.mxu0 0.0
    %279 = vmatprep.subr.mxu0 0.0
    %280 = vmatpush1.msra.mxu0 0.0
    %281 = vmatprep.subr.mxu0 0.0
    %282 = vmatpush1.msra.mxu0 0.0
    %283 = vmatprep.subr.mxu0 0.0
    %284 = vmatpush1.msra.mxu0 0.0
    %285 = vmatprep.subr.mxu0 0.0
    %286 = vmatpush1.msra.mxu0 0.0
    %287 = vmatprep.subr.mxu0 0.0
    %288 = vmatpush1.msra.mxu0 0.0
    %289 = vmatprep.subr.mxu0 0.0
    %290 = vmatpush1.msra.mxu0 0.0
    %291 = vmatprep.subr.mxu0 0.0
    %292 = vmatpush1.msra.mxu0 0.0
    %293 = vmatprep.subr.mxu0 0.0
    %294 = vmatpush1.msra.mxu0 0.0
    %295 = vmatprep.subr.mxu0 0.0
    %296 = vmatpush1.msra.mxu0 0.0
    %297 = vmatprep.subr.mxu0 0.0
    %298 = vmatpush1.msra.mxu0 0.0
    %299 = vmatprep.subr.mxu0 0.0
    %300 = vmatpush1.msra.mxu0 0.0
    %301 = vmatprep.subr.mxu0 0.0
    %302 = vmatpush1.msra.mxu0 0.0
    %303 = vmatprep.subr.mxu0 0.0
    %304 = vmatpush1.msra.mxu0 0.0
    %305 = vmatprep.subr.mxu0 0.0
    %306 = vmatpush1.msra.mxu0 0.0
    %307 = vmatprep.subr.mxu0 0.0
    %308 = vmatpush1.msra.mxu0 0.0
    %309 = vmatprep.subr.mxu0 0.0
    %310 = vmatpush1.msra.mxu0 0.0
    %311 = vmatprep.subr.mxu0 0.0
    %312 = vmatpush1.msra.mxu0 0.0
    %313 = vmatprep.subr.mxu0 0.0
    %314 = vmatpush1.msra.mxu0 0.0
    %315 = vmatprep.subr.mxu0 0.0
    %316 = vmatpush1.msra.mxu0 0.0
    %317 = vmatprep.subr.mxu0 0.0
    %318 = vmatpush1.msra.mxu0 0.0
    %319 = vmatprep.subr.mxu0 0.0
    %320 = vmatpush1.msra.mxu0 0.0
    %321 = vmatprep.subr.mxu0 0.0
    %322 = vmatpush1.msra.mxu0 0.0
    %323 = vmatprep.mubr.f32.mxu0 0.0
    %v324 = vand.u32 %v79, 4294901760
    %v325 = vsub.f32 %v79, %v324
    %326 = vmatmul.mubr.f32.gmra.mrb[0].mxu0 %v325
    %v327 = vpop.f32.mrb[0].mxu0
    %v328 = vadd.f32 %v248, %v327
    %v329 = vpop.f32.mrb[0].mxu0
    %330 = vdwg.mxu0
    %331 = vmatprep.subr.mxu0 0.0
    %v332 = vand.u32 %v66, 4294901760
    %333 = vmatpush1.msra.mxu0 %v332
    %334 = vmatprep.subr.mxu0 0.0
    %v335 = vand.u32 %v67, 4294901760
    %336 = vmatpush1.msra.mxu0 %v335
    %337 = vmatprep.subr.mxu0 0.0
    %v338 = vand.u32 %v68, 4294901760
    %339 = vmatpush1.msra.mxu0 %v338
    %340 = vmatprep.subr.mxu0 0.0
    %v341 = vand.u32 %v69, 4294901760
    %342 = vmatpush1.msra.mxu0 %v341
    %343 = vmatprep.subr.mxu0 0.0
    %344 = vmatpush1.msra.mxu0 0.0
    %345 = vmatprep.subr.mxu0 0.0
    %346 = vmatpush1.msra.mxu0 0.0
    %347 = vmatprep.subr.mxu0 0.0
    %348 = vmatpush1.msra.mxu0 0.0
    %349 = vmatprep.subr.mxu0 0.0
    %350 = vmatpush1.msra.mxu0 0.0
    %351 = vmatprep.subr.mxu0 0.0
    %352 = vmatpush1.msra.mxu0 0.0
    %353 = vmatprep.subr.mxu0 0.0
    %354 = vmatpush1.msra.mxu0 0.0
    %355 = vmatprep.subr.mxu0 0.0
    %356 = vmatpush1.msra.mxu0 0.0
    %357 = vmatprep.subr.mxu0 0.0
    %358 = vmatpush1.msra.mxu0 0.0
    %359 = vmatprep.subr.mxu0 0.0
    %360 = vmatpush1.msra.mxu0 0.0
    %361 = vmatprep.subr.mxu0 0.0
    %362 = vmatpush1.msra.mxu0 0.0
    %363 = vmatprep.subr.mxu0 0.0
    %364 = vmatpush1.msra.mxu0 0.0
    %365 = vmatprep.subr.mxu0 0.0
    %366 = vmatpush1.msra.mxu0 0.0
    %367 = vmatprep.subr.mxu0 0.0
    %368 = vmatpush1.msra.mxu0 0.0
    %369 = vmatprep.subr.mxu0 0.0
    %370 = vmatpush1.msra.mxu0 0.0
    %371 = vmatprep.subr.mxu0 0.0
    %372 = vmatpush1.msra.mxu0 0.0
    %373 = vmatprep.subr.mxu0 0.0
    %374 = vmatpush1.msra.mxu0 0.0
    %375 = vmatprep.subr.mxu0 0.0
    %376 = vmatpush1.msra.mxu0 0.0
    %377 = vmatprep.subr.mxu0 0.0
    %378 = vmatpush1.msra.mxu0 0.0
    %379 = vmatprep.subr.mxu0 0.0
    %380 = vmatpush1.msra.mxu0 0.0
    %381 = vmatprep.subr.mxu0 0.0
    %382 = vmatpush1.msra.mxu0 0.0
    %383 = vmatprep.subr.mxu0 0.0
    %384 = vmatpush1.msra.mxu0 0.0
    %385 = vmatprep.subr.mxu0 0.0
    %386 = vmatpush1.msra.mxu0 0.0
    %387 = vmatprep.subr.mxu0 0.0
    %388 = vmatpush1.msra.mxu0 0.0
    %389 = vmatprep.subr.mxu0 0.0
    %390 = vmatpush1.msra.mxu0 0.0
    %391 = vmatprep.subr.mxu0 0.0
    %392 = vmatpush1.msra.mxu0 0.0
    %393 = vmatprep.subr.mxu0 0.0
    %394 = vmatpush1.msra.mxu0 0.0
    %395 = vmatprep.subr.mxu0 0.0
    %396 = vmatpush1.msra.mxu0 0.0
    %397 = vmatprep.subr.mxu0 0.0
    %398 = vmatpush1.msra.mxu0 0.0
    %399 = vmatprep.mubr.f32.mxu0 0.0
    %v400 = vand.u32 %v79, 4294901760
    %v401 = vsub.f32 %v79, %v400
    %v402 = vand.u32 %v401, 4294901760
    %403 = vmatmul.mubr.f32.gmra.mrb[0].mxu0 %v402
    %v404 = vpop.f32.mrb[0].mxu0
    %v405 = vadd.f32 %v328, %v404
    %v406 = vpop.f32.mrb[0].mxu0
    %407 = vdwg.mxu0
    %408 = vmatprep.subr.mxu0 0.0
    %v409 = vand.u32 %v66, 4294901760
    %v410 = vsub.f32 %v66, %v409
    %v411 = vand.u32 %v410, 4294901760
    %412 = vmatpush1.msra.mxu0 %v411
    %413 = vmatprep.subr.mxu0 0.0
    %v414 = vand.u32 %v67, 4294901760
    %v415 = vsub.f32 %v67, %v414
    %v416 = vand.u32 %v415, 4294901760
    %417 = vmatpush1.msra.mxu0 %v416
    %418 = vmatprep.subr.mxu0 0.0
    %v419 = vand.u32 %v68, 4294901760
    %v420 = vsub.f32 %v68, %v419
    %v421 = vand.u32 %v420, 4294901760
    %422 = vmatpush1.msra.mxu0 %v421
    %423 = vmatprep.subr.mxu0 0.0
    %v424 = vand.u32 %v69, 4294901760
    %v425 = vsub.f32 %v69, %v424
    %v426 = vand.u32 %v425, 4294901760
    %427 = vmatpush1.msra.mxu0 %v426
    %428 = vmatprep.subr.mxu0 0.0
    %429 = vmatpush1.msra.mxu0 0.0
    %430 = vmatprep.subr.mxu0 0.0
    %431 = vmatpush1.msra.mxu0 0.0
    %432 = vmatprep.subr.mxu0 0.0
    %433 = vmatpush1.msra.mxu0 0.0
    %434 = vmatprep.subr.mxu0 0.0
    %435 = vmatpush1.msra.mxu0 0.0
    %436 = vmatprep.subr.mxu0 0.0
    %437 = vmatpush1.msra.mxu0 0.0
    %438 = vmatprep.subr.mxu0 0.0
    %439 = vmatpush1.msra.mxu0 0.0
    %440 = vmatprep.subr.mxu0 0.0
    %441 = vmatpush1.msra.mxu0 0.0
    %442 = vmatprep.subr.mxu0 0.0
    %443 = vmatpush1.msra.mxu0 0.0
    %444 = vmatprep.subr.mxu0 0.0
    %445 = vmatpush1.msra.mxu0 0.0
    %446 = vmatprep.subr.mxu0 0.0
    %447 = vmatpush1.msra.mxu0 0.0
    %448 = vmatprep.subr.mxu0 0.0
    %449 = vmatpush1.msra.mxu0 0.0
    %450 = vmatprep.subr.mxu0 0.0
    %451 = vmatpush1.msra.mxu0 0.0
    %452 = vmatprep.subr.mxu0 0.0
    %453 = vmatpush1.msra.mxu0 0.0
    %454 = vmatprep.subr.mxu0 0.0
    %455 = vmatpush1.msra.mxu0 0.0
    %456 = vmatprep.subr.mxu0 0.0
    %457 = vmatpush1.msra.mxu0 0.0
    %458 = vmatprep.subr.mxu0 0.0
    %459 = vmatpush1.msra.mxu0 0.0
    %460 = vmatprep.subr.mxu0 0.0
    %461 = vmatpush1.msra.mxu0 0.0
    %462 = vmatprep.subr.mxu0 0.0
    %463 = vmatpush1.msra.mxu0 0.0
    %464 = vmatprep.subr.mxu0 0.0
    %465 = vmatpush1.msra.mxu0 0.0
    %466 = vmatprep.subr.mxu0 0.0
    %467 = vmatpush1.msra.mxu0 0.0
    %468 = vmatprep.subr.mxu0 0.0
    %469 = vmatpush1.msra.mxu0 0.0
    %470 = vmatprep.subr.mxu0 0.0
    %471 = vmatpush1.msra.mxu0 0.0
    %472 = vmatprep.subr.mxu0 0.0
    %473 = vmatpush1.msra.mxu0 0.0
    %474 = vmatprep.subr.mxu0 0.0
    %475 = vmatpush1.msra.mxu0 0.0
    %476 = vmatprep.subr.mxu0 0.0
    %477 = vmatpush1.msra.mxu0 0.0
    %478 = vmatprep.subr.mxu0 0.0
    %479 = vmatpush1.msra.mxu0 0.0
    %480 = vmatprep.subr.mxu0 0.0
    %481 = vmatpush1.msra.mxu0 0.0
    %482 = vmatprep.subr.mxu0 0.0
    %483 = vmatpush1.msra.mxu0 0.0
    %484 = vmatprep.mubr.f32.mxu0 0.0
    %v485 = vand.u32 %v79, 4294901760
    %486 = vmatmul.mubr.f32.gmra.mrb[0].mxu0 %v485
    %v487 = vpop.f32.mrb[0].mxu0
    %v488 = vadd.f32 %v405, %v487
    %v489 = vpop.f32.mrb[0].mxu0
    %490 = vdwg.mxu0
    %491 = vmatprep.subr.mxu0 0.0
    %v492 = vand.u32 %v66, 4294901760
    %493 = vmatpush1.msra.mxu0 %v492
    %494 = vmatprep.subr.mxu0 0.0
    %v495 = vand.u32 %v67, 4294901760
    %496 = vmatpush1.msra.mxu0 %v495
    %497 = vmatprep.subr.mxu0 0.0
    %v498 = vand.u32 %v68, 4294901760
    %499 = vmatpush1.msra.mxu0 %v498
    %500 = vmatprep.subr.mxu0 0.0
    %v501 = vand.u32 %v69, 4294901760
    %502 = vmatpush1.msra.mxu0 %v501
    %503 = vmatprep.subr.mxu0 0.0
    %504 = vmatpush1.msra.mxu0 0.0
    %505 = vmatprep.subr.mxu0 0.0
    %506 = vmatpush1.msra.mxu0 0.0
    %507 = vmatprep.subr.mxu0 0.0
    %508 = vmatpush1.msra.mxu0 0.0
    %509 = vmatprep.subr.mxu0 0.0
    %510 = vmatpush1.msra.mxu0 0.0
    %511 = vmatprep.subr.mxu0 0.0
    %512 = vmatpush1.msra.mxu0 0.0
    %513 = vmatprep.subr.mxu0 0.0
    %514 = vmatpush1.msra.mxu0 0.0
    %515 = vmatprep.subr.mxu0 0.0
    %516 = vmatpush1.msra.mxu0 0.0
    %517 = vmatprep.subr.mxu0 0.0
    %518 = vmatpush1.msra.mxu0 0.0
    %519 = vmatprep.subr.mxu0 0.0
    %520 = vmatpush1.msra.mxu0 0.0
    %521 = vmatprep.subr.mxu0 0.0
    %522 = vmatpush1.msra.mxu0 0.0
    %523 = vmatprep.subr.mxu0 0.0
    %524 = vmatpush1.msra.mxu0 0.0
    %525 = vmatprep.subr.mxu0 0.0
    %526 = vmatpush1.msra.mxu0 0.0
    %527 = vmatprep.subr.mxu0 0.0
    %528 = vmatpush1.msra.mxu0 0.0
    %529 = vmatprep.subr.mxu0 0.0
    %530 = vmatpush1.msra.mxu0 0.0
    %531 = vmatprep.subr.mxu0 0.0
    %532 = vmatpush1.msra.mxu0 0.0
    %533 = vmatprep.subr.mxu0 0.0
    %534 = vmatpush1.msra.mxu0 0.0
    %535 = vmatprep.subr.mxu0 0.0
    %536 = vmatpush1.msra.mxu0 0.0
    %537 = vmatprep.subr.mxu0 0.0
    %538 = vmatpush1.msra.mxu0 0.0
    %539 = vmatprep.subr.mxu0 0.0
    %540 = vmatpush1.msra.mxu0 0.0
    %541 = vmatprep.subr.mxu0 0.0
    %542 = vmatpush1.msra.mxu0 0.0
    %543 = vmatprep.subr.mxu0 0.0
    %544 = vmatpush1.msra.mxu0 0.0
    %545 = vmatprep.subr.mxu0 0.0
    %546 = vmatpush1.msra.mxu0 0.0
    %547 = vmatprep.subr.mxu0 0.0
    %548 = vmatpush1.msra.mxu0 0.0
    %549 = vmatprep.subr.mxu0 0.0
    %550 = vmatpush1.msra.mxu0 0.0
    %551 = vmatprep.subr.mxu0 0.0
    %552 = vmatpush1.msra.mxu0 0.0
    %553 = vmatprep.subr.mxu0 0.0
    %554 = vmatpush1.msra.mxu0 0.0
    %555 = vmatprep.subr.mxu0 0.0
    %556 = vmatpush1.msra.mxu0 0.0
    %557 = vmatprep.subr.mxu0 0.0
    %558 = vmatpush1.msra.mxu0 0.0
    %559 = vmatprep.mubr.f32.mxu0 0.0
    %v560 = vand.u32 %v79, 4294901760
    %561 = vmatmul.mubr.f32.gmra.mrb[0].mxu0 %v560
    %v562 = vpop.f32.mrb[0].mxu0
    %v563 = vadd.f32 %v488, %v562
    %v564 = vpop.f32.mrb[0].mxu0
    %565 = vdwg.mxu0
    %566 = vst [vmem:[#allocation9] sm:$0xff] %v563
    // Predicated region
    $region32: #{tpu_custom_call.1} parent=1 // pred_check
      _
    $region33: #{tpu_custom_call.1} parent=1 // pred_check_branch
      %568 = sbr.rel (0) target = $region35
    $region34: #{tpu_custom_call.1} parent=1 // pred_region
      %s570 = ssub.s32 128, 128
      %571 = vsyncadd [#allocation8], %s570
      %s573 = sshll.u32 [#allocation9], 4
      %s574 = int_to_ptr.vmem [resolvable:$true] %s573
      %576 = dma.vmem_to_hbm [thread:$0]  %s574, 128, %s4, [#allocation8]
    $region35: #{tpu_custom_call.1} parent=1 // pred_fallthru
      _
    // Predicated region
    $region36: #{tpu_custom_call.1} parent=1 // pred_check
      _
    $region37: #{tpu_custom_call.1} parent=1 // pred_check_branch
      %578 = sbr.rel (0) target = $region39
    $region38: #{tpu_custom_call.1} parent=1 // pred_region
      %579 = dma.done [#allocation8], 128
    $region39: #{tpu_custom_call.1} parent=1 // pred_fallthru
      _
    %580 = vsyncpa [#allocation7], 1
    %581 = vsyncpa [#allocation8], 1
  %582 = vsyncmov [#allocation3]
  %s583 = vpop.sfrf %582
  %p584 = scmp.eq.s32.totalorder %s583, 0
  %p585 = pneg %p584
  %587 = shalt.err (%p585)
  %s588 = scalar_lea.sflag [#allocation3], 1
  %589 = vsyncmov %s588
  %s590 = vpop.sfrf %589
  %p591 = scmp.eq.s32.totalorder %s590, 0
  %p592 = pneg %p591
  %594 = shalt.err (%p592)
  %s595 = scalar_lea.sflag [#allocation3], 2
  %596 = vsyncmov %s595
  %s597 = vpop.sfrf %596
  %p598 = scmp.eq.s32.totalorder %s597, 0
  %p599 = pneg %p598
  %601 = shalt.err (%p599)
  %s602 = scalar_lea.sflag [#allocation3], 3
  %603 = vsyncmov %s602
  %s604 = vpop.sfrf %603
  %p605 = scmp.eq.s32.totalorder %s604, 0
  %p606 = pneg %p605
  %608 = shalt.err (%p606)
  %s609 = scalar_lea.sflag [#allocation3], 4
  %610 = vsyncmov %s609
  %s611 = vpop.sfrf %610
  %p612 = scmp.eq.s32.totalorder %s611, 0
  %p613 = pneg %p612
  %615 = shalt.err (%p613)
  %s616 = scalar_lea.sflag [#allocation3], 5
  %617 = vsyncmov %s616
  %s618 = vpop.sfrf %617
  %p619 = scmp.eq.s32.totalorder %s618, 0
  %p620 = pneg %p619
  %622 = shalt.err (%p620)
  %s623 = scalar_lea.sflag [#allocation3], 6
  %624 = vsyncmov %s623
  %s625 = vpop.sfrf %624
  %p626 = scmp.eq.s32.totalorder %s625, 0
  %p627 = pneg %p626
  %629 = shalt.err (%p627)
  %s630 = scalar_lea.sflag [#allocation3], 7
  %631 = vsyncmov %s630
  %s632 = vpop.sfrf %631
  %p633 = scmp.eq.s32.totalorder %s632, 0
  %p634 = pneg %p633
  %636 = shalt.err (%p634)

</llo_original>
